<compile_context>
chip_gen: v7x
topology: tpu7x:2x2x1
jax: 0.10.0
libtpu: 0.0.40
codegen_flags: <defaults>
</compile_context>

<pallas_src>
import functools
from typing import NamedTuple

import jax
import jax.numpy as jnp
from jax.experimental import pallas as pl
from jax.experimental.pallas import tpu as pltpu

LANE = 128


def _round_up(x, m):
    return ((x + m - 1) // m) * m


# ----------------------------------------------------------------------------- kernel


def _mlp_kernel(n_hidden, x_ref, w_in_ref, w_hid_ref, w_out_ref,
                b_hid_ref, b_out_ref, o_ref):
    """Whole forward pass for one batch tile; all weights stay resident in VMEM.

    x_ref:     [tile, Din_p]            bf16
    w_in_ref:  [Din_p, H_p]             bf16
    w_hid_ref: [n_hidden-1, H_p, H_p]   bf16 (stacked hidden->hidden weights)
    w_out_ref: [H_p, Dout_p]            bf16
    b_hid_ref: [n_hidden, H_p]          f32
    b_out_ref: [1, Dout_p]              f32
    o_ref:     [tile, Dout_p]           f32
    """
    h = x_ref[...]                                            # bf16 activations

    # Hidden layer 0.
    z = jnp.dot(h, w_in_ref[...], preferred_element_type=jnp.float32)
    z = z + b_hid_ref[0:1, :]                                 # ref slice: free view
    h = jnp.maximum(z, 0.0).astype(jnp.bfloat16)

    # Remaining hidden layers (statically unrolled at trace time).
    for l in range(n_hidden - 1):
        z = jnp.dot(h, w_hid_ref[l], preferred_element_type=jnp.float32)
        z = z + b_hid_ref[l + 1:l + 2, :]
        h = jnp.maximum(z, 0.0).astype(jnp.bfloat16)

    # Output layer + Sigmoid (f32, lane-dense store).
    logits = jnp.dot(h, w_out_ref[...], preferred_element_type=jnp.float32)
    logits = logits + b_out_ref[...]
    o_ref[...] = jax.nn.sigmoid(logits)


# ----------------------------------------------------------------------------- params


class PackedParams(NamedTuple):
    w_in: jax.Array    # [Din_p, H_p]   bf16
    w_hid: jax.Array   # [L-1, H_p, H_p] bf16 (dummy [1,H_p,H_p] zeros if L == 1)
    w_out: jax.Array   # [H_p, Dout_p]  bf16
    b_hid: jax.Array   # [L, H_p]       f32
    b_out: jax.Array   # [1, Dout_p]    f32
    input_dim: int
    output_dim: int
    n_hidden: int


def prepare_params(params):
    """One-time pack/pad/cast of [(W0,b0),...,(WL,bL)] (W: [in,out] f32, b: [out] f32).

    Hoisted out of the forward path so each call does not re-pay the pad+bf16 conversion
    pass over all the weights.  All hidden dims must be equal (true for hidden_dims=[512]*4).
    """
    L = len(params) - 1                                       # number of hidden layers
    Din = params[0][0].shape[0]
    H = params[0][0].shape[1]
    for w, _ in params[1:-1]:
        assert w.shape == (H, H), "all hidden dims must be equal"
    Dout = params[-1][0].shape[1]

    Din_p = _round_up(Din, LANE)
    H_p = _round_up(H, LANE)
    Dout_p = _round_up(Dout, LANE)

    f32, bf16 = jnp.float32, jnp.bfloat16

    def pad2(a, rows, cols):
        a = a.astype(f32)
        return jnp.pad(a, ((0, rows - a.shape[0]), (0, cols - a.shape[1])))

    w_in = pad2(params[0][0], Din_p, H_p).astype(bf16)
    if L > 1:
        w_hid = jnp.stack([pad2(w, H_p, H_p) for w, _ in params[1:L]]).astype(bf16)
    else:
        w_hid = jnp.zeros((1, H_p, H_p), bf16)                # dummy, never read
    w_out = pad2(params[L][0], H_p, Dout_p).astype(bf16)

    b_hid = jnp.stack([jnp.pad(b.astype(f32).reshape(-1), (0, H_p - b.shape[-1]))
                       for _, b in params[:L]])               # [L, H_p] f32
    b_out = jnp.pad(params[L][1].astype(f32).reshape(1, -1),
                    ((0, 0), (0, Dout_p - Dout)))             # [1, Dout_p] f32

    return PackedParams(w_in, w_hid, w_out, b_hid, b_out, Din, Dout, L)


# ----------------------------------------------------------------------------- forward


def multiclass_classifier_forward(x, packed: PackedParams, *, batch_tile=None):
    """x: [B, input_dim] f32 -> [B, output_dim] f32 (sigmoid class confidences)."""
    B, Din = x.shape
    assert Din == packed.input_dim
    L = packed.n_hidden
    Din_p, H_p = packed.w_in.shape
    Dout_p = packed.w_out.shape[1]
    Dout = packed.output_dim

    # ---- per-tile footprint (bytes per batch row in VMEM) --------------------
    per_row_bytes = (2 * Din_p * 2                 # double-buffered bf16 x tile
                     + 2 * Dout_p * 4              # double-buffered f32 out tile
                     + 3 * max(Din_p, H_p, Dout_p) * 4)   # ~live f32 activation temporaries
    weight_bytes = ((packed.w_in.size + packed.w_hid.size + packed.w_out.size) * 2
                    + (packed.b_hid.size + packed.b_out.size) * 4)   # single-buffered

    # ---- batch tile selection (multiple of 16 rows for bf16 sublane packing) --
    if batch_tile is None:
        budget = (48 << 20) - weight_bytes         # conservative: fits v7x's 64 MiB VMEM
        max_tile = max(16, min(1024, (budget // per_row_bytes) // 16 * 16))
        batch_tile = min(_round_up(B, 16), max_tile)   # grid=1 for small/medium batches
    batch_tile = max(16, _round_up(batch_tile, 16))
    B_p = _round_up(B, batch_tile)
    grid = B_p // batch_tile

    # ---- pad/cast the batch (bf16 first: no padded f32 copy) -----------------
    x_p = jnp.pad(x.astype(jnp.bfloat16), ((0, B_p - B), (0, Din_p - Din)))

    # ---- VMEM budget: 1x resident weights + 2x pipelined tiles + activations --
    vmem_limit = int(weight_bytes + batch_tile * per_row_bytes) + (2 << 20)
    vmem_limit = min(max(vmem_limit, 8 << 20), 64 << 20)

    # Resident parameters: constant index_map, single-buffered (no wasted double buffer).
    resident = functools.partial(pl.BlockSpec, pipeline_mode=pl.Buffered(1))
    in_specs = [
        pl.BlockSpec((batch_tile, Din_p), lambda i: (i, 0)),          # streamed per tile
        resident(packed.w_in.shape, lambda i: (0, 0)),
        resident(packed.w_hid.shape, lambda i: (0, 0, 0)),
        resident(packed.w_out.shape, lambda i: (0, 0)),
        resident(packed.b_hid.shape, lambda i: (0, 0)),
        resident(packed.b_out.shape, lambda i: (0, 0)),
    ]
    out_specs = pl.BlockSpec((batch_tile, Dout_p), lambda i: (i, 0))  # lane-dense store

    cost = pl.CostEstimate(
        flops=2 * B_p * (Din_p * H_p + (L - 1) * H_p * H_p + H_p * Dout_p),
        transcendentals=B_p * Dout_p,
        bytes_accessed=weight_bytes + B_p * Din_p * 2 + B_p * Dout_p * 4,
    )

    out = pl.pallas_call(
        functools.partial(_mlp_kernel, L),
        out_shape=jax.ShapeDtypeStruct((B_p, Dout_p), jnp.float32),
        grid_spec=pltpu.PrefetchScalarGridSpec(
            num_scalar_prefetch=0,
            grid=(grid,),
            in_specs=in_specs,
            out_specs=out_specs,
        ),
        compiler_params=pltpu.CompilerParams(
            dimension_semantics=("parallel",),
            vmem_limit_bytes=vmem_limit),
        cost_estimate=cost,
    )(x_p, packed.w_in, packed.w_hid, packed.w_out, packed.b_hid, packed.b_out)

    return out[:B, :Dout]


# ----------------------------------------------------------------------------- helpers


def init_params(key, input_dim, hidden_dims, output_dim):
    """PyTorch nn.Linear default init: U(-1/sqrt(fan_in), +1/sqrt(fan_in)) for W and b.
    W stored as [in, out] (transposed from torch), b as [out]."""
    dims = [input_dim] + list(hidden_dims) + [output_dim]
    params = []
    for i in range(len(dims) - 1):
        fan_in, fan_out = dims[i], dims[i + 1]
        key, kw, kb = jax.random.split(key, 3)
        bound = float(fan_in) ** -0.5
        w = jax.random.uniform(kw, (fan_in, fan_out), jnp.float32, -bound, bound)
        b = jax.random.uniform(kb, (fan_out,), jnp.float32, -bound, bound)
        params.append((w, b))
    return params


def reference_forward_f32(x, params):
    h = x
    for w, b in params[:-1]:
        h = jnp.maximum(h @ w + b, 0.0)
    w, b = params[-1]
    return jax.nn.sigmoid(h @ w + b)


def reference_forward_bf16(x, params):
    """Same bf16-input / f32-accumulate recipe as the kernel, for a tight tolerance check."""
    h = x.astype(jnp.bfloat16)
    for w, b in params[:-1]:
        z = jnp.dot(h, w.astype(jnp.bfloat16), preferred_element_type=jnp.float32) + b
        h = jnp.maximum(z, 0.0).astype(jnp.bfloat16)
    w, b = params[-1]
    z = jnp.dot(h, w.astype(jnp.bfloat16), preferred_element_type=jnp.float32) + b
    return jax.nn.sigmoid(z)


if __name__ == "__main__":
    # Small shapes consistent with the module: flat features -> 4 hidden ReLU layers -> sigmoid.
    batch = 16
    input_dim = 32
    hidden_dims = [64] * 4
    output_dim = 10

    key = jax.random.PRNGKey(0)
    key, kx = jax.random.split(key)
    x = jax.random.normal(kx, (batch, input_dim), dtype=jnp.float32)

    params = init_params(key, input_dim, hidden_dims, output_dim)
    packed = prepare_params(params)            # one-time pack/pad/cast (hoisted out of forward)

    out = multiclass_classifier_forward(x, packed)
    out = jax.block_until_ready(out)

    assert out.shape == (batch, output_dim)

    ref_bf16 = reference_forward_bf16(x, params)
    ref_f32 = reference_forward_f32(x, params)
    assert jnp.allclose(out, ref_bf16, atol=2e-3, rtol=0.0), \
        float(jnp.max(jnp.abs(out - ref_bf16)))
    assert jnp.allclose(out, ref_f32, atol=5e-2, rtol=0.0), \
        float(jnp.max(jnp.abs(out - ref_f32)))

    print("KERNEL_OK")
</pallas_src>

<mosaic_0001>
module attributes {stable_mosaic.version = 11 : i64} {
  func.func @_mlp_kernel(%arg0: i32, %arg1: memref<16x128xbf16, #tpu.memory_space<vmem>>, %arg2: memref<128x128xbf16, #tpu.memory_space<vmem>>, %arg3: memref<3x128x128xbf16, #tpu.memory_space<vmem>>, %arg4: memref<128x128xbf16, #tpu.memory_space<vmem>>, %arg5: memref<4x128xf32, #tpu.memory_space<vmem>>, %arg6: memref<1x128xf32, #tpu.memory_space<vmem>>, %arg7: memref<16x128xf32, #tpu.memory_space<vmem>>) attributes {dimension_semantics = [#tpu.dimension_semantics<parallel>], iteration_bounds = array<i64: 1>, scalar_prefetch = 0 : i64, scratch_operands = 0 : i64, tpu.core_type = #tpu.core_type<tc>, window_params = [{transform_indices = @transform_0, window_bounds = array<i64: 16, 128>}, {pipeline_mode = #tpu.pipeline_mode<synchronous>, transform_indices = @transform_1, window_bounds = array<i64: 128, 128>}, {pipeline_mode = #tpu.pipeline_mode<synchronous>, transform_indices = @transform_2, window_bounds = array<i64: 3, 128, 128>}, {pipeline_mode = #tpu.pipeline_mode<synchronous>, transform_indices = @transform_3, window_bounds = array<i64: 128, 128>}, {pipeline_mode = #tpu.pipeline_mode<synchronous>, transform_indices = @transform_4, window_bounds = array<i64: 4, 128>}, {pipeline_mode = #tpu.pipeline_mode<synchronous>, transform_indices = @transform_5, window_bounds = array<i64: 1, 128>}, {transform_indices = @transform_6, window_bounds = array<i64: 16, 128>}]} {
    %c0 = arith.constant 0 : index
    %c0_0 = arith.constant 0 : index
    %0 = vector.load %arg1[%c0, %c0_0] : memref<16x128xbf16, #tpu.memory_space<vmem>>, vector<16x128xbf16>
    %c0_1 = arith.constant 0 : index
    %c0_2 = arith.constant 0 : index
    %1 = vector.load %arg2[%c0_1, %c0_2] : memref<128x128xbf16, #tpu.memory_space<vmem>>, vector<128x128xbf16>
    %cst = arith.constant dense<0.000000e+00> : vector<16x128xf32>
    %2 = tpu.matmul %0, %1, %cst {dimension_numbers = #tpu.dot_dimension_numbers<[1], [0], [0], [1], [0, 0, 1, 1], [], []>} : vector<16x128xbf16>, vector<128x128xbf16>, vector<16x128xf32> -> vector<16x128xf32>
    %c0_3 = arith.constant 0 : index
    %c0_4 = arith.constant 0 : index
    %3 = vector.load %arg5[%c0_3, %c0_4] : memref<4x128xf32, #tpu.memory_space<vmem>>, vector<1x128xf32>
    %4 = vector.broadcast %3 : vector<1x128xf32> to vector<16x128xf32>
    %5 = arith.addf %2, %4 : vector<16x128xf32>
    %cst_5 = arith.constant 0.000000e+00 : f32
    %6 = vector.broadcast %cst_5 : f32 to vector<16x128xf32>
    %7 = arith.maximumf %5, %6 : vector<16x128xf32>
    %8 = arith.truncf %7 : vector<16x128xf32> to vector<16x128xbf16>
    %c0_6 = arith.constant 0 : index
    %c0_7 = arith.constant 0 : index
    %c0_8 = arith.constant 0 : index
    %9 = vector.load %arg3[%c0_6, %c0_7, %c0_8] : memref<3x128x128xbf16, #tpu.memory_space<vmem>>, vector<1x128x128xbf16>
    %10 = vector.shape_cast %9 : vector<1x128x128xbf16> to vector<128x128xbf16>
    %cst_9 = arith.constant dense<0.000000e+00> : vector<16x128xf32>
    %11 = tpu.matmul %8, %10, %cst_9 {dimension_numbers = #tpu.dot_dimension_numbers<[1], [0], [0], [1], [0, 0, 1, 1], [], []>} : vector<16x128xbf16>, vector<128x128xbf16>, vector<16x128xf32> -> vector<16x128xf32>
    %c1 = arith.constant 1 : index
    %c0_10 = arith.constant 0 : index
    %12 = vector.load %arg5[%c1, %c0_10] : memref<4x128xf32, #tpu.memory_space<vmem>>, vector<1x128xf32>
    %13 = vector.broadcast %12 : vector<1x128xf32> to vector<16x128xf32>
    %14 = arith.addf %11, %13 : vector<16x128xf32>
    %cst_11 = arith.constant 0.000000e+00 : f32
    %15 = vector.broadcast %cst_11 : f32 to vector<16x128xf32>
    %16 = arith.maximumf %14, %15 : vector<16x128xf32>
    %17 = arith.truncf %16 : vector<16x128xf32> to vector<16x128xbf16>
    %c1_12 = arith.constant 1 : index
    %c0_13 = arith.constant 0 : index
    %c0_14 = arith.constant 0 : index
    %18 = vector.load %arg3[%c1_12, %c0_13, %c0_14] : memref<3x128x128xbf16, #tpu.memory_space<vmem>>, vector<1x128x128xbf16>
    %19 = vector.shape_cast %18 : vector<1x128x128xbf16> to vector<128x128xbf16>
    %cst_15 = arith.constant dense<0.000000e+00> : vector<16x128xf32>
    %20 = tpu.matmul %17, %19, %cst_15 {dimension_numbers = #tpu.dot_dimension_numbers<[1], [0], [0], [1], [0, 0, 1, 1], [], []>} : vector<16x128xbf16>, vector<128x128xbf16>, vector<16x128xf32> -> vector<16x128xf32>
    %c2 = arith.constant 2 : index
    %c0_16 = arith.constant 0 : index
    %21 = vector.load %arg5[%c2, %c0_16] : memref<4x128xf32, #tpu.memory_space<vmem>>, vector<1x128xf32>
    %22 = vector.broadcast %21 : vector<1x128xf32> to vector<16x128xf32>
    %23 = arith.addf %20, %22 : vector<16x128xf32>
    %cst_17 = arith.constant 0.000000e+00 : f32
    %24 = vector.broadcast %cst_17 : f32 to vector<16x128xf32>
    %25 = arith.maximumf %23, %24 : vector<16x128xf32>
    %26 = arith.truncf %25 : vector<16x128xf32> to vector<16x128xbf16>
    %c2_18 = arith.constant 2 : index
    %c0_19 = arith.constant 0 : index
    %c0_20 = arith.constant 0 : index
    %27 = vector.load %arg3[%c2_18, %c0_19, %c0_20] : memref<3x128x128xbf16, #tpu.memory_space<vmem>>, vector<1x128x128xbf16>
    %28 = vector.shape_cast %27 : vector<1x128x128xbf16> to vector<128x128xbf16>
    %cst_21 = arith.constant dense<0.000000e+00> : vector<16x128xf32>
    %29 = tpu.matmul %26, %28, %cst_21 {dimension_numbers = #tpu.dot_dimension_numbers<[1], [0], [0], [1], [0, 0, 1, 1], [], []>} : vector<16x128xbf16>, vector<128x128xbf16>, vector<16x128xf32> -> vector<16x128xf32>
    %c3 = arith.constant 3 : index
    %c0_22 = arith.constant 0 : index
    %30 = vector.load %arg5[%c3, %c0_22] : memref<4x128xf32, #tpu.memory_space<vmem>>, vector<1x128xf32>
    %31 = vector.broadcast %30 : vector<1x128xf32> to vector<16x128xf32>
    %32 = arith.addf %29, %31 : vector<16x128xf32>
    %cst_23 = arith.constant 0.000000e+00 : f32
    %33 = vector.broadcast %cst_23 : f32 to vector<16x128xf32>
    %34 = arith.maximumf %32, %33 : vector<16x128xf32>
    %35 = arith.truncf %34 : vector<16x128xf32> to vector<16x128xbf16>
    %c0_24 = arith.constant 0 : index
    %c0_25 = arith.constant 0 : index
    %36 = vector.load %arg4[%c0_24, %c0_25] : memref<128x128xbf16, #tpu.memory_space<vmem>>, vector<128x128xbf16>
    %cst_26 = arith.constant dense<0.000000e+00> : vector<16x128xf32>
    %37 = tpu.matmul %35, %36, %cst_26 {dimension_numbers = #tpu.dot_dimension_numbers<[1], [0], [0], [1], [0, 0, 1, 1], [], []>} : vector<16x128xbf16>, vector<128x128xbf16>, vector<16x128xf32> -> vector<16x128xf32>
    %c0_27 = arith.constant 0 : index
    %c0_28 = arith.constant 0 : index
    %38 = vector.load %arg6[%c0_27, %c0_28] : memref<1x128xf32, #tpu.memory_space<vmem>>, vector<1x128xf32>
    %39 = vector.broadcast %38 : vector<1x128xf32> to vector<16x128xf32>
    %40 = arith.addf %37, %39 : vector<16x128xf32>
    %41 = arith.negf %40 : vector<16x128xf32>
    %42 = math.exp %41 : vector<16x128xf32>
    %cst_29 = arith.constant 1.000000e+00 : f32
    %43 = vector.broadcast %cst_29 : f32 to vector<16x128xf32>
    %44 = arith.addf %43, %42 : vector<16x128xf32>
    %45 = arith.divf %43, %44 : vector<16x128xf32>
    %c0_30 = arith.constant 0 : index
    %c0_31 = arith.constant 0 : index
    %46 = vector.load %arg7[%c0_30, %c0_31] : memref<16x128xf32, #tpu.memory_space<vmem>>, vector<16x128xf32>
    tpu.vector_store %arg7[%c0_30, %c0_31], %45 {strides = array<i32>} : memref<16x128xf32, #tpu.memory_space<vmem>>, vector<16x128xf32>,
    return
  }
  func.func @transform_0(%arg0: i32) -> (i32, i32) {
    %c0_i32 = arith.constant 0 : i32
    %c0_i32_0 = arith.constant 0 : i32
    return %arg0, %c0_i32 : i32, i32
  }
  func.func @transform_1(%arg0: i32) -> (i32, i32) {
    %c0_i32 = arith.constant 0 : i32
    %c0_i32_0 = arith.constant 0 : i32
    %c0_i32_1 = arith.constant 0 : i32
    return %c0_i32, %c0_i32_0 : i32, i32
  }
  func.func @transform_2(%arg0: i32) -> (i32, i32, i32) {
    %c0_i32 = arith.constant 0 : i32
    %c0_i32_0 = arith.constant 0 : i32
    %c0_i32_1 = arith.constant 0 : i32
    %c0_i32_2 = arith.constant 0 : i32
    return %c0_i32, %c0_i32_0, %c0_i32_1 : i32, i32, i32
  }
  func.func @transform_3(%arg0: i32) -> (i32, i32) {
    %c0_i32 = arith.constant 0 : i32
    %c0_i32_0 = arith.constant 0 : i32
    %c0_i32_1 = arith.constant 0 : i32
    return %c0_i32, %c0_i32_0 : i32, i32
  }
  func.func @transform_4(%arg0: i32) -> (i32, i32) {
    %c0_i32 = arith.constant 0 : i32
    %c0_i32_0 = arith.constant 0 : i32
    %c0_i32_1 = arith.constant 0 : i32
    return %c0_i32, %c0_i32_0 : i32, i32
  }
  func.func @transform_5(%arg0: i32) -> (i32, i32) {
    %c0_i32 = arith.constant 0 : i32
    %c0_i32_0 = arith.constant 0 : i32
    %c0_i32_1 = arith.constant 0 : i32
    return %c0_i32, %c0_i32_0 : i32, i32
  }
  func.func @transform_6(%arg0: i32) -> (i32, i32) {
    %c0_i32 = arith.constant 0 : i32
    %c0_i32_0 = arith.constant 0 : i32
    return %arg0, %c0_i32 : i32, i32
  }
}

</mosaic_0001>

<llo_original>
// kernel: tpu_custom_call.1
$region0: #{tpu_custom_call.1}
  #allocation0 [shape = 'u32[]', space=smem, size = 0x4, offset = 0x4, fixed_abs, tag = 'smem constant byte address 0x4 - core index']
  #allocation1 [shape = 'u32[144,128]{1,0:T(1,128)}', space=vmem, size = 0x12000, scoped, tag = 'internal scratch']
  %s0 = inlined_call_operand.hbm [shape: bf16[16,128], index: 0, kind: input, shape index: {}]
  %s1 = inlined_call_operand.hbm [shape: bf16[128,128], index: 1, kind: input, shape index: {}]
  %s2 = inlined_call_operand.hbm [shape: bf16[3,128,128], index: 2, kind: input, shape index: {}]
  %s3 = inlined_call_operand.hbm [shape: bf16[128,128], index: 3, kind: input, shape index: {}]
  %s4 = inlined_call_operand.vmem [shape: f32[4,128], index: 4, kind: input, shape index: {}]
  %s5 = inlined_call_operand.vmem [shape: f32[1,128], index: 5, kind: input, shape index: {}]
  %s6 = inlined_call_operand.hbm [shape: f32[16,128], index: 6, kind: output, shape index: {}]
  %s7 = sld [smem:[#allocation0]]
  $region50: #{tpu_custom_call.1} parent=0
    _
  %s9 = ssub.s32 1, %s7
  %s10 = scalar_select 0, %s9, %s7
  $region1: #{tpu_custom_call.1} parent=0
    #allocation2 [shape = 'u8[4096]{0}', space=vmem, size = 0x1000, scoped, tag = 'input window, operand 0, single buffered']
    #allocation3 [shape = 's32[1]{0}', space=sflag, size = 0x4, scoped, tag = 'scoped memory for tpu_custom_call.1']
    #allocation4 [shape = 's32[1]{0}', space=sflag, size = 0x4, scoped, tag = 'scoped memory for tpu_custom_call.1']
    #allocation5 [shape = 'u8[32768]{0}', space=vmem, size = 0x8000, scoped, tag = 'input window, operand 1, single buffered']
    #allocation6 [shape = 's32[1]{0}', space=sflag, size = 0x4, scoped, tag = 'scoped memory for tpu_custom_call.1']
    #allocation7 [shape = 'u8[98304]{0}', space=vmem, size = 0x18000, scoped, tag = 'input window, operand 2, single buffered']
    #allocation8 [shape = 'u8[32768]{0}', space=vmem, size = 0x8000, scoped, tag = 'input window, operand 3, single buffered']
    #allocation9 [shape = 's32[1]{0}', space=sflag, size = 0x4, scoped, tag = 'scoped memory for tpu_custom_call.1']
    #allocation10 [shape = 'u8[8192]{0}', space=vmem, size = 0x2000, scoped, tag = 'output window, operand 0, single buffered']
    %11 = vsyncpa [#allocation3], 0
    %12 = vsyncpa [#allocation6], 0
    %13 = vsyncpa [#allocation9], 0
    %14 = vsyncpa [#allocation4], 0
    // Predicated region
    $region2: #{tpu_custom_call.1} parent=1 // pred_check
      _
    $region3: #{tpu_custom_call.1} parent=1 // pred_check_branch
      %16 = sbr.rel (0) target = $region5
    $region4: #{tpu_custom_call.1} parent=1 // pred_region
      %s18 = ssub.s32 128, 128
      %19 = vsyncadd [#allocation3], %s18
      %s20 = sshll.u32 [#allocation2], 4
      %s21 = int_to_ptr.vmem [resolvable:$true] %s20
      %26 = dma.hbm_to_vmem [thread:$0]  %s0, 128, %s21, [#allocation3], 64, 64, 4
    $region5: #{tpu_custom_call.1} parent=1 // pred_fallthru
      _
    // Predicated region
    $region6: #{tpu_custom_call.1} parent=1 // pred_check
      _
    $region7: #{tpu_custom_call.1} parent=1 // pred_check_branch
      %28 = sbr.rel (0) target = $region9
    $region8: #{tpu_custom_call.1} parent=1 // pred_region
      %s30 = ssub.s32 1024, 1024
      %31 = vsyncadd [#allocation6], %s30
      %s32 = sshll.u32 [#allocation5], 4
      %s33 = int_to_ptr.vmem [resolvable:$true] %s32
      %38 = dma.hbm_to_vmem [thread:$0]  %s1, 1024, %s33, [#allocation6], 64, 64, 4
    $region9: #{tpu_custom_call.1} parent=1 // pred_fallthru
      _
    // Predicated region
    $region10: #{tpu_custom_call.1} parent=1 // pred_check
      _
    $region11: #{tpu_custom_call.1} parent=1 // pred_check_branch
      %40 = sbr.rel (0) target = $region13
    $region12: #{tpu_custom_call.1} parent=1 // pred_region
      %s42 = ssub.s32 3072, 3072
      %43 = vsyncadd [#allocation6], %s42
      %s44 = sshll.u32 [#allocation7], 4
      %s45 = int_to_ptr.vmem [resolvable:$true] %s44
      %50 = dma.hbm_to_vmem [thread:$0]  %s2, 3072, %s45, [#allocation6], 64, 64, 4
    $region13: #{tpu_custom_call.1} parent=1 // pred_fallthru
      _
    // Predicated region
    $region14: #{tpu_custom_call.1} parent=1 // pred_check
      _
    $region15: #{tpu_custom_call.1} parent=1 // pred_check_branch
      %52 = sbr.rel (0) target = $region17
    $region16: #{tpu_custom_call.1} parent=1 // pred_region
      %s54 = ssub.s32 1024, 1024
      %55 = vsyncadd [#allocation9], %s54
      %s56 = sshll.u32 [#allocation8], 4
      %s57 = int_to_ptr.vmem [resolvable:$true] %s56
      %62 = dma.hbm_to_vmem [thread:$0]  %s3, 1024, %s57, [#allocation9], 64, 64, 4
    $region17: #{tpu_custom_call.1} parent=1 // pred_fallthru
      _
    // Predicated region
    $region18: #{tpu_custom_call.1} parent=1 // pred_check
      _
    $region19: #{tpu_custom_call.1} parent=1 // pred_check_branch
      %64 = sbr.rel (0) target = $region21
    $region20: #{tpu_custom_call.1} parent=1 // pred_region
      _
    $region21: #{tpu_custom_call.1} parent=1 // pred_fallthru
      _
    // Predicated region
    $region22: #{tpu_custom_call.1} parent=1 // pred_check
      _
    $region23: #{tpu_custom_call.1} parent=1 // pred_check_branch
      %66 = sbr.rel (0) target = $region25
    $region24: #{tpu_custom_call.1} parent=1 // pred_region
      _
    $region25: #{tpu_custom_call.1} parent=1 // pred_fallthru
      _
    // Predicated region
    $region26: #{tpu_custom_call.1} parent=1 // pred_check
      _
    $region27: #{tpu_custom_call.1} parent=1 // pred_check_branch
      %68 = sbr.rel (0) target = $region29
    $region28: #{tpu_custom_call.1} parent=1 // pred_region
      %69 = dma.done [#allocation3], 128
    $region29: #{tpu_custom_call.1} parent=1 // pred_fallthru
      _
    // Predicated region
    $region30: #{tpu_custom_call.1} parent=1 // pred_check
      _
    $region31: #{tpu_custom_call.1} parent=1 // pred_check_branch
      %71 = sbr.rel (0) target = $region33
    $region32: #{tpu_custom_call.1} parent=1 // pred_region
      %72 = dma.done [#allocation6], 1024
    $region33: #{tpu_custom_call.1} parent=1 // pred_fallthru
      _
    // Predicated region
    $region34: #{tpu_custom_call.1} parent=1 // pred_check
      _
    $region35: #{tpu_custom_call.1} parent=1 // pred_check_branch
      %74 = sbr.rel (0) target = $region37
    $region36: #{tpu_custom_call.1} parent=1 // pred_region
      %75 = dma.done [#allocation6], 3072
    $region37: #{tpu_custom_call.1} parent=1 // pred_fallthru
      _
    // Predicated region
    $region38: #{tpu_custom_call.1} parent=1 // pred_check
      _
    $region39: #{tpu_custom_call.1} parent=1 // pred_check_branch
      %77 = sbr.rel (0) target = $region41
    $region40: #{tpu_custom_call.1} parent=1 // pred_region
      %78 = dma.done [#allocation9], 1024
    $region41: #{tpu_custom_call.1} parent=1 // pred_fallthru
      _
    %v80 = vld [vmem:[#allocation2] sm:$0xf]
    %v81 = vld [vmem:[#allocation2 + $0x4] sm:$0xf]
    %v82 = vld [vmem:[#allocation5] sm:$0xf]
    %v83 = vld [vmem:[#allocation5 + $0x4] sm:$0xf]
    %v84 = vld [vmem:[#allocation5 + $0x8] sm:$0xf]
    %v85 = vld [vmem:[#allocation5 + $0xc] sm:$0xf]
    %v86 = vld [vmem:[#allocation5 + $0x10] sm:$0xf]
    %v87 = vld [vmem:[#allocation5 + $0x14] sm:$0xf]
    %v88 = vld [vmem:[#allocation5 + $0x18] sm:$0xf]
    %v89 = vld [vmem:[#allocation5 + $0x1c] sm:$0xf]
    %v90 = vld [vmem:[#allocation5 + $0x20] sm:$0xf]
    %v91 = vld [vmem:[#allocation5 + $0x24] sm:$0xf]
    %v92 = vld [vmem:[#allocation5 + $0x28] sm:$0xf]
    %v93 = vld [vmem:[#allocation5 + $0x2c] sm:$0xf]
    %v94 = vld [vmem:[#allocation5 + $0x30] sm:$0xf]
    %v95 = vld [vmem:[#allocation5 + $0x34] sm:$0xf]
    %v96 = vld [vmem:[#allocation5 + $0x38] sm:$0xf]
    %v97 = vld [vmem:[#allocation5 + $0x3c] sm:$0xf]
    %v98 = vld [vmem:[%s4] sm:$0x1]
    %v99 = vlaneseq
    %v100 = vshrl.u32 %v99, 7
    %v101 = vsub.s32 0, %v100
    %v102 = vrot.slane %v98, %v101
    %v105 = vunpack.c.l.b16 %v80
    %v106 = vunpack.c.l.b16 %v81
    %v107 = vpack.c.b16 %v106, %v105
    %v125 = vunpack.c.l.b16 %v82
    %v126 = vunpack.c.l.b16 %v83
    %v127 = vunpack.c.l.b16 %v84
    %v128 = vunpack.c.l.b16 %v85
    %v129 = vunpack.c.l.b16 %v86
    %v130 = vunpack.c.l.b16 %v87
    %v131 = vunpack.c.l.b16 %v88
    %v132 = vunpack.c.l.b16 %v89
    %v133 = vunpack.c.l.b16 %v90
    %v134 = vunpack.c.l.b16 %v91
    %v135 = vunpack.c.l.b16 %v92
    %v136 = vunpack.c.l.b16 %v93
    %v137 = vunpack.c.l.b16 %v94
    %v138 = vunpack.c.l.b16 %v95
    %v139 = vunpack.c.l.b16 %v96
    %v140 = vunpack.c.l.b16 %v97
    %v141 = vpack.c.b16 %v126, %v125
    %v142 = vpack.c.b16 %v128, %v127
    %v143 = vpack.c.b16 %v130, %v129
    %v144 = vpack.c.b16 %v132, %v131
    %v145 = vpack.c.b16 %v134, %v133
    %v146 = vpack.c.b16 %v136, %v135
    %v147 = vpack.c.b16 %v138, %v137
    %v148 = vpack.c.b16 %v140, %v139
    %157 = vmatprep.subr.bf16.mxu0 0
    %158 = vmatpush1.bf16.msra.mxu0 %v141
    %159 = vmatprep.subr.bf16.mxu0 0
    %160 = vmatpush1.bf16.msra.mxu0 %v142
    %161 = vmatprep.subr.bf16.mxu0 0
    %162 = vmatpush1.bf16.msra.mxu0 %v143
    %163 = vmatprep.subr.bf16.mxu0 0
    %164 = vmatpush1.bf16.msra.mxu0 %v144
    %165 = vmatprep.subr.bf16.mxu0 0
    %166 = vmatpush1.bf16.msra.mxu0 %v145
    %167 = vmatprep.subr.bf16.mxu0 0
    %168 = vmatpush1.bf16.msra.mxu0 %v146
    %169 = vmatprep.subr.bf16.mxu0 0
    %170 = vmatpush1.bf16.msra.mxu0 %v147
    %171 = vmatprep.subr.bf16.mxu0 0
    %172 = vmatpush1.bf16.msra.mxu0 %v148
    %173 = vmatprep.subr.bf16.mxu0 0
    %174 = vmatpush1.bf16.msra.mxu0 0
    %175 = vmatprep.subr.bf16.mxu0 0
    %176 = vmatpush1.bf16.msra.mxu0 0
    %177 = vmatprep.subr.bf16.mxu0 0
    %178 = vmatpush1.bf16.msra.mxu0 0
    %179 = vmatprep.subr.bf16.mxu0 0
    %180 = vmatpush1.bf16.msra.mxu0 0
    %181 = vmatprep.subr.bf16.mxu0 0
    %182 = vmatpush1.bf16.msra.mxu0 0
    %183 = vmatprep.subr.bf16.mxu0 0
    %184 = vmatpush1.bf16.msra.mxu0 0
    %185 = vmatprep.subr.bf16.mxu0 0
    %186 = vmatpush1.bf16.msra.mxu0 0
    %187 = vmatprep.subr.bf16.mxu0 0
    %188 = vmatpush1.bf16.msra.mxu0 0
    %189 = vmatprep.mubr.bf16.mxu0 0
    %190 = vmatmul.mubr.bf16.gmra.mrb[0].mxu0 %v107
    %v191 = vpop.f32.mrb[0].mxu0
    %v192 = vadd.f32 %v102, %v191
    %v193 = vpop.f32.mrb[0].mxu0
    %v194 = vpop.f32.mrb[0].mxu0
    %v195 = vadd.f32 %v102, %v194
    %v196 = vpop.f32.mrb[0].mxu0
    %197 = vdwg.mxu0
    %v198 = vmax.f32 %v192, 0.0
    %v199 = vmax.f32 %v195, 0.0
    %v200 = vpack.c.bf16 %v199, %v198
    %v201 = vld [vmem:[#allocation7] sm:$0xf]
    %v202 = vld [vmem:[#allocation7 + $0x4] sm:$0xf]
    %v203 = vld [vmem:[#allocation7 + $0x8] sm:$0xf]
    %v204 = vld [vmem:[#allocation7 + $0xc] sm:$0xf]
    %v205 = vld [vmem:[#allocation7 + $0x10] sm:$0xf]
    %v206 = vld [vmem:[#allocation7 + $0x14] sm:$0xf]
    %v207 = vld [vmem:[#allocation7 + $0x18] sm:$0xf]
    %v208 = vld [vmem:[#allocation7 + $0x1c] sm:$0xf]
    %v209 = vld [vmem:[#allocation7 + $0x20] sm:$0xf]
    %v210 = vld [vmem:[#allocation7 + $0x24] sm:$0xf]
    %v211 = vld [vmem:[#allocation7 + $0x28] sm:$0xf]
    %v212 = vld [vmem:[#allocation7 + $0x2c] sm:$0xf]
    %v213 = vld [vmem:[#allocation7 + $0x30] sm:$0xf]
    %v214 = vld [vmem:[#allocation7 + $0x34] sm:$0xf]
    %v215 = vld [vmem:[#allocation7 + $0x38] sm:$0xf]
    %v216 = vld [vmem:[#allocation7 + $0x3c] sm:$0xf]
    %v217 = vld [vmem:[%s4 + $0x1] sm:$0x1]
    %v218 = vlaneseq
    %v219 = vshrl.u32 %v218, 7
    %v220 = vsub.s32 0, %v219
    %v221 = vrot.slane %v217, %v220
    %v238 = vunpack.c.l.b16 %v201
    %v239 = vunpack.c.l.b16 %v202
    %v240 = vunpack.c.l.b16 %v203
    %v241 = vunpack.c.l.b16 %v204
    %v242 = vunpack.c.l.b16 %v205
    %v243 = vunpack.c.l.b16 %v206
    %v244 = vunpack.c.l.b16 %v207
    %v245 = vunpack.c.l.b16 %v208
    %v246 = vunpack.c.l.b16 %v209
    %v247 = vunpack.c.l.b16 %v210
    %v248 = vunpack.c.l.b16 %v211
    %v249 = vunpack.c.l.b16 %v212
    %v250 = vunpack.c.l.b16 %v213
    %v251 = vunpack.c.l.b16 %v214
    %v252 = vunpack.c.l.b16 %v215
    %v253 = vunpack.c.l.b16 %v216
    %v254 = vpack.c.b16 %v239, %v238
    %v255 = vpack.c.b16 %v241, %v240
    %v256 = vpack.c.b16 %v243, %v242
    %v257 = vpack.c.b16 %v245, %v244
    %v258 = vpack.c.b16 %v247, %v246
    %v259 = vpack.c.b16 %v249, %v248
    %v260 = vpack.c.b16 %v251, %v250
    %v261 = vpack.c.b16 %v253, %v252
    %270 = vmatprep.subr.bf16.mxu0 0
    %271 = vmatpush1.bf16.msra.mxu0 %v254
    %272 = vmatprep.subr.bf16.mxu0 0
    %273 = vmatpush1.bf16.msra.mxu0 %v255
    %274 = vmatprep.subr.bf16.mxu0 0
    %275 = vmatpush1.bf16.msra.mxu0 %v256
    %276 = vmatprep.subr.bf16.mxu0 0
    %277 = vmatpush1.bf16.msra.mxu0 %v257
    %278 = vmatprep.subr.bf16.mxu0 0
    %279 = vmatpush1.bf16.msra.mxu0 %v258
    %280 = vmatprep.subr.bf16.mxu0 0
    %281 = vmatpush1.bf16.msra.mxu0 %v259
    %282 = vmatprep.subr.bf16.mxu0 0
    %283 = vmatpush1.bf16.msra.mxu0 %v260
    %284 = vmatprep.subr.bf16.mxu0 0
    %285 = vmatpush1.bf16.msra.mxu0 %v261
    %286 = vmatprep.subr.bf16.mxu0 0
    %287 = vmatpush1.bf16.msra.mxu0 0
    %288 = vmatprep.subr.bf16.mxu0 0
    %289 = vmatpush1.bf16.msra.mxu0 0
    %290 = vmatprep.subr.bf16.mxu0 0
    %291 = vmatpush1.bf16.msra.mxu0 0
    %292 = vmatprep.subr.bf16.mxu0 0
    %293 = vmatpush1.bf16.msra.mxu0 0
    %294 = vmatprep.subr.bf16.mxu0 0
    %295 = vmatpush1.bf16.msra.mxu0 0
    %296 = vmatprep.subr.bf16.mxu0 0
    %297 = vmatpush1.bf16.msra.mxu0 0
    %298 = vmatprep.subr.bf16.mxu0 0
    %299 = vmatpush1.bf16.msra.mxu0 0
    %300 = vmatprep.subr.bf16.mxu0 0
    %301 = vmatpush1.bf16.msra.mxu0 0
    %302 = vmatprep.mubr.bf16.mxu0 0
    %303 = vmatmul.mubr.bf16.gmra.mrb[0].mxu0 %v200
    %v304 = vpop.f32.mrb[0].mxu0
    %v305 = vadd.f32 %v221, %v304
    %v306 = vpop.f32.mrb[0].mxu0
    %v307 = vpop.f32.mrb[0].mxu0
    %v308 = vadd.f32 %v221, %v307
    %v309 = vpop.f32.mrb[0].mxu0
    %310 = vdwg.mxu0
    %v311 = vmax.f32 %v305, 0.0
    %v312 = vmax.f32 %v308, 0.0
    %v313 = vpack.c.bf16 %v312, %v311
    %s314 = scalar_lea.vmem [#allocation7], 64
    %v315 = vld [vmem:[%s314] sm:$0xf]
    %v316 = vld [vmem:[%s314 + $0x4] sm:$0xf]
    %v317 = vld [vmem:[%s314 + $0x8] sm:$0xf]
    %v318 = vld [vmem:[%s314 + $0xc] sm:$0xf]
    %v319 = vld [vmem:[%s314 + $0x10] sm:$0xf]
    %v320 = vld [vmem:[%s314 + $0x14] sm:$0xf]
    %v321 = vld [vmem:[%s314 + $0x18] sm:$0xf]
    %v322 = vld [vmem:[%s314 + $0x1c] sm:$0xf]
    %v323 = vld [vmem:[%s314 + $0x20] sm:$0xf]
    %v324 = vld [vmem:[%s314 + $0x24] sm:$0xf]
    %v325 = vld [vmem:[%s314 + $0x28] sm:$0xf]
    %v326 = vld [vmem:[%s314 + $0x2c] sm:$0xf]
    %v327 = vld [vmem:[%s314 + $0x30] sm:$0xf]
    %v328 = vld [vmem:[%s314 + $0x34] sm:$0xf]
    %v329 = vld [vmem:[%s314 + $0x38] sm:$0xf]
    %v330 = vld [vmem:[%s314 + $0x3c] sm:$0xf]
    %v331 = vld [vmem:[%s4 + $0x2] sm:$0x1]
    %v332 = vlaneseq
    %v333 = vshrl.u32 %v332, 7
    %v334 = vsub.s32 0, %v333
    %v335 = vrot.slane %v331, %v334
    %v352 = vunpack.c.l.b16 %v315
    %v353 = vunpack.c.l.b16 %v316
    %v354 = vunpack.c.l.b16 %v317
    %v355 = vunpack.c.l.b16 %v318
    %v356 = vunpack.c.l.b16 %v319
    %v357 = vunpack.c.l.b16 %v320
    %v358 = vunpack.c.l.b16 %v321
    %v359 = vunpack.c.l.b16 %v322
    %v360 = vunpack.c.l.b16 %v323
    %v361 = vunpack.c.l.b16 %v324
    %v362 = vunpack.c.l.b16 %v325
    %v363 = vunpack.c.l.b16 %v326
    %v364 = vunpack.c.l.b16 %v327
    %v365 = vunpack.c.l.b16 %v328
    %v366 = vunpack.c.l.b16 %v329
    %v367 = vunpack.c.l.b16 %v330
    %v368 = vpack.c.b16 %v353, %v352
    %v369 = vpack.c.b16 %v355, %v354
    %v370 = vpack.c.b16 %v357, %v356
    %v371 = vpack.c.b16 %v359, %v358
    %v372 = vpack.c.b16 %v361, %v360
    %v373 = vpack.c.b16 %v363, %v362
    %v374 = vpack.c.b16 %v365, %v364
    %v375 = vpack.c.b16 %v367, %v366
    %384 = vmatprep.subr.bf16.mxu0 0
    %385 = vmatpush1.bf16.msra.mxu0 %v368
    %386 = vmatprep.subr.bf16.mxu0 0
    %387 = vmatpush1.bf16.msra.mxu0 %v369
    %388 = vmatprep.subr.bf16.mxu0 0
    %389 = vmatpush1.bf16.msra.mxu0 %v370
    %390 = vmatprep.subr.bf16.mxu0 0
    %391 = vmatpush1.bf16.msra.mxu0 %v371
    %392 = vmatprep.subr.bf16.mxu0 0
    %393 = vmatpush1.bf16.msra.mxu0 %v372
    %394 = vmatprep.subr.bf16.mxu0 0
    %395 = vmatpush1.bf16.msra.mxu0 %v373
    %396 = vmatprep.subr.bf16.mxu0 0
    %397 = vmatpush1.bf16.msra.mxu0 %v374
    %398 = vmatprep.subr.bf16.mxu0 0
    %399 = vmatpush1.bf16.msra.mxu0 %v375
    %400 = vmatprep.subr.bf16.mxu0 0
    %401 = vmatpush1.bf16.msra.mxu0 0
    %402 = vmatprep.subr.bf16.mxu0 0
    %403 = vmatpush1.bf16.msra.mxu0 0
    %404 = vmatprep.subr.bf16.mxu0 0
    %405 = vmatpush1.bf16.msra.mxu0 0
    %406 = vmatprep.subr.bf16.mxu0 0
    %407 = vmatpush1.bf16.msra.mxu0 0
    %408 = vmatprep.subr.bf16.mxu0 0
    %409 = vmatpush1.bf16.msra.mxu0 0
    %410 = vmatprep.subr.bf16.mxu0 0
    %411 = vmatpush1.bf16.msra.mxu0 0
    %412 = vmatprep.subr.bf16.mxu0 0
    %413 = vmatpush1.bf16.msra.mxu0 0
    %414 = vmatprep.subr.bf16.mxu0 0
    %415 = vmatpush1.bf16.msra.mxu0 0
    %416 = vmatprep.mubr.bf16.mxu0 0
    %417 = vmatmul.mubr.bf16.gmra.mrb[0].mxu0 %v313
    %v418 = vpop.f32.mrb[0].mxu0
    %v419 = vadd.f32 %v335, %v418
    %v420 = vpop.f32.mrb[0].mxu0
    %v421 = vpop.f32.mrb[0].mxu0
    %v422 = vadd.f32 %v335, %v421
    %v423 = vpop.f32.mrb[0].mxu0
    %424 = vdwg.mxu0
    %v425 = vmax.f32 %v419, 0.0
    %v426 = vmax.f32 %v422, 0.0
    %v427 = vpack.c.bf16 %v426, %v425
    %s428 = scalar_lea.vmem [#allocation7], 128
    %v429 = vld [vmem:[%s428] sm:$0xf]
    %v430 = vld [vmem:[%s428 + $0x4] sm:$0xf]
    %v431 = vld [vmem:[%s428 + $0x8] sm:$0xf]
    %v432 = vld [vmem:[%s428 + $0xc] sm:$0xf]
    %v433 = vld [vmem:[%s428 + $0x10] sm:$0xf]
    %v434 = vld [vmem:[%s428 + $0x14] sm:$0xf]
    %v435 = vld [vmem:[%s428 + $0x18] sm:$0xf]
    %v436 = vld [vmem:[%s428 + $0x1c] sm:$0xf]
    %v437 = vld [vmem:[%s428 + $0x20] sm:$0xf]
    %v438 = vld [vmem:[%s428 + $0x24] sm:$0xf]
    %v439 = vld [vmem:[%s428 + $0x28] sm:$0xf]
    %v440 = vld [vmem:[%s428 + $0x2c] sm:$0xf]
    %v441 = vld [vmem:[%s428 + $0x30] sm:$0xf]
    %v442 = vld [vmem:[%s428 + $0x34] sm:$0xf]
    %v443 = vld [vmem:[%s428 + $0x38] sm:$0xf]
    %v444 = vld [vmem:[%s428 + $0x3c] sm:$0xf]
    %v445 = vld [vmem:[%s4 + $0x3] sm:$0x1]
    %v446 = vlaneseq
    %v447 = vshrl.u32 %v446, 7
    %v448 = vsub.s32 0, %v447
    %v449 = vrot.slane %v445, %v448
    %v466 = vunpack.c.l.b16 %v429
    %v467 = vunpack.c.l.b16 %v430
    %v468 = vunpack.c.l.b16 %v431
    %v469 = vunpack.c.l.b16 %v432
    %v470 = vunpack.c.l.b16 %v433
    %v471 = vunpack.c.l.b16 %v434
    %v472 = vunpack.c.l.b16 %v435
    %v473 = vunpack.c.l.b16 %v436
    %v474 = vunpack.c.l.b16 %v437
    %v475 = vunpack.c.l.b16 %v438
    %v476 = vunpack.c.l.b16 %v439
    %v477 = vunpack.c.l.b16 %v440
    %v478 = vunpack.c.l.b16 %v441
    %v479 = vunpack.c.l.b16 %v442
    %v480 = vunpack.c.l.b16 %v443
    %v481 = vunpack.c.l.b16 %v444
    %v482 = vpack.c.b16 %v467, %v466
    %v483 = vpack.c.b16 %v469, %v468
    %v484 = vpack.c.b16 %v471, %v470
    %v485 = vpack.c.b16 %v473, %v472
    %v486 = vpack.c.b16 %v475, %v474
    %v487 = vpack.c.b16 %v477, %v476
    %v488 = vpack.c.b16 %v479, %v478
    %v489 = vpack.c.b16 %v481, %v480
    %498 = vmatprep.subr.bf16.mxu0 0
    %499 = vmatpush1.bf16.msra.mxu0 %v482
    %500 = vmatprep.subr.bf16.mxu0 0
    %501 = vmatpush1.bf16.msra.mxu0 %v483
    %502 = vmatprep.subr.bf16.mxu0 0
    %503 = vmatpush1.bf16.msra.mxu0 %v484
    %504 = vmatprep.subr.bf16.mxu0 0
    %505 = vmatpush1.bf16.msra.mxu0 %v485
    %506 = vmatprep.subr.bf16.mxu0 0
    %507 = vmatpush1.bf16.msra.mxu0 %v486
    %508 = vmatprep.subr.bf16.mxu0 0
    %509 = vmatpush1.bf16.msra.mxu0 %v487
    %510 = vmatprep.subr.bf16.mxu0 0
    %511 = vmatpush1.bf16.msra.mxu0 %v488
    %512 = vmatprep.subr.bf16.mxu0 0
    %513 = vmatpush1.bf16.msra.mxu0 %v489
    %514 = vmatprep.subr.bf16.mxu0 0
    %515 = vmatpush1.bf16.msra.mxu0 0
    %516 = vmatprep.subr.bf16.mxu0 0
    %517 = vmatpush1.bf16.msra.mxu0 0
    %518 = vmatprep.subr.bf16.mxu0 0
    %519 = vmatpush1.bf16.msra.mxu0 0
    %520 = vmatprep.subr.bf16.mxu0 0
    %521 = vmatpush1.bf16.msra.mxu0 0
    %522 = vmatprep.subr.bf16.mxu0 0
    %523 = vmatpush1.bf16.msra.mxu0 0
    %524 = vmatprep.subr.bf16.mxu0 0
    %525 = vmatpush1.bf16.msra.mxu0 0
    %526 = vmatprep.subr.bf16.mxu0 0
    %527 = vmatpush1.bf16.msra.mxu0 0
    %528 = vmatprep.subr.bf16.mxu0 0
    %529 = vmatpush1.bf16.msra.mxu0 0
    %530 = vmatprep.mubr.bf16.mxu0 0
    %531 = vmatmul.mubr.bf16.gmra.mrb[0].mxu0 %v427
    %v532 = vpop.f32.mrb[0].mxu0
    %v533 = vadd.f32 %v449, %v532
    %v534 = vpop.f32.mrb[0].mxu0
    %v535 = vpop.f32.mrb[0].mxu0
    %v536 = vadd.f32 %v449, %v535
    %v537 = vpop.f32.mrb[0].mxu0
    %538 = vdwg.mxu0
    %v539 = vmax.f32 %v533, 0.0
    %v540 = vmax.f32 %v536, 0.0
    %v541 = vpack.c.bf16 %v540, %v539
    %v542 = vld [vmem:[#allocation8] sm:$0xf]
    %v543 = vld [vmem:[#allocation8 + $0x4] sm:$0xf]
    %v544 = vld [vmem:[#allocation8 + $0x8] sm:$0xf]
    %v545 = vld [vmem:[#allocation8 + $0xc] sm:$0xf]
    %v546 = vld [vmem:[#allocation8 + $0x10] sm:$0xf]
    %v547 = vld [vmem:[#allocation8 + $0x14] sm:$0xf]
    %v548 = vld [vmem:[#allocation8 + $0x18] sm:$0xf]
    %v549 = vld [vmem:[#allocation8 + $0x1c] sm:$0xf]
    %v550 = vld [vmem:[#allocation8 + $0x20] sm:$0xf]
    %v551 = vld [vmem:[#allocation8 + $0x24] sm:$0xf]
    %v552 = vld [vmem:[#allocation8 + $0x28] sm:$0xf]
    %v553 = vld [vmem:[#allocation8 + $0x2c] sm:$0xf]
    %v554 = vld [vmem:[#allocation8 + $0x30] sm:$0xf]
    %v555 = vld [vmem:[#allocation8 + $0x34] sm:$0xf]
    %v556 = vld [vmem:[#allocation8 + $0x38] sm:$0xf]
    %v557 = vld [vmem:[#allocation8 + $0x3c] sm:$0xf]
    %v558 = vld [vmem:[%s5] sm:$0x1]
    %v560 = vlaneseq
    %v561 = vshrl.u32 %v560, 7
    %v562 = vsub.s32 0, %v561
    %v563 = vrot.slane %v558, %v562
    %v581 = vunpack.c.l.b16 %v542
    %v582 = vunpack.c.l.b16 %v543
    %v583 = vunpack.c.l.b16 %v544
    %v584 = vunpack.c.l.b16 %v545
    %v585 = vunpack.c.l.b16 %v546
    %v586 = vunpack.c.l.b16 %v547
    %v587 = vunpack.c.l.b16 %v548
    %v588 = vunpack.c.l.b16 %v549
    %v589 = vunpack.c.l.b16 %v550
    %v590 = vunpack.c.l.b16 %v551
    %v591 = vunpack.c.l.b16 %v552
    %v592 = vunpack.c.l.b16 %v553
    %v593 = vunpack.c.l.b16 %v554
    %v594 = vunpack.c.l.b16 %v555
    %v595 = vunpack.c.l.b16 %v556
    %v596 = vunpack.c.l.b16 %v557
    %v597 = vpack.c.b16 %v582, %v581
    %v598 = vpack.c.b16 %v584, %v583
    %v599 = vpack.c.b16 %v586, %v585
    %v600 = vpack.c.b16 %v588, %v587
    %v601 = vpack.c.b16 %v590, %v589
    %v602 = vpack.c.b16 %v592, %v591
    %v603 = vpack.c.b16 %v594, %v593
    %v604 = vpack.c.b16 %v596, %v595
    %613 = vmatprep.subr.bf16.mxu0 0
    %614 = vmatpush1.bf16.msra.mxu0 %v597
    %615 = vmatprep.subr.bf16.mxu0 0
    %616 = vmatpush1.bf16.msra.mxu0 %v598
    %617 = vmatprep.subr.bf16.mxu0 0
    %618 = vmatpush1.bf16.msra.mxu0 %v599
    %619 = vmatprep.subr.bf16.mxu0 0
    %620 = vmatpush1.bf16.msra.mxu0 %v600
    %621 = vmatprep.subr.bf16.mxu0 0
    %622 = vmatpush1.bf16.msra.mxu0 %v601
    %623 = vmatprep.subr.bf16.mxu0 0
    %624 = vmatpush1.bf16.msra.mxu0 %v602
    %625 = vmatprep.subr.bf16.mxu0 0
    %626 = vmatpush1.bf16.msra.mxu0 %v603
    %627 = vmatprep.subr.bf16.mxu0 0
    %628 = vmatpush1.bf16.msra.mxu0 %v604
    %629 = vmatprep.subr.bf16.mxu0 0
    %630 = vmatpush1.bf16.msra.mxu0 0
    %631 = vmatprep.subr.bf16.mxu0 0
    %632 = vmatpush1.bf16.msra.mxu0 0
    %633 = vmatprep.subr.bf16.mxu0 0
    %634 = vmatpush1.bf16.msra.mxu0 0
    %635 = vmatprep.subr.bf16.mxu0 0
    %636 = vmatpush1.bf16.msra.mxu0 0
    %637 = vmatprep.subr.bf16.mxu0 0
    %638 = vmatpush1.bf16.msra.mxu0 0
    %639 = vmatprep.subr.bf16.mxu0 0
    %640 = vmatpush1.bf16.msra.mxu0 0
    %641 = vmatprep.subr.bf16.mxu0 0
    %642 = vmatpush1.bf16.msra.mxu0 0
    %643 = vmatprep.subr.bf16.mxu0 0
    %644 = vmatpush1.bf16.msra.mxu0 0
    %645 = vmatprep.mubr.bf16.mxu0 0
    %646 = vmatmul.mubr.bf16.gmra.mrb[0].mxu0 %v541
    %v647 = vpop.f32.mrb[0].mxu0
    %v648 = vadd.f32 %v563, %v647
    %v649 = vpop.f32.mrb[0].mxu0
    %v650 = vpop.f32.mrb[0].mxu0
    %v651 = vadd.f32 %v563, %v650
    %v652 = vpop.f32.mrb[0].mxu0
    %653 = vdwg.mxu0
    %v654 = vxor.u32 %v648, 2147483648
    %v655 = vxor.u32 %v651, 2147483648
    %v656 = vmul.f32 %v654, 1.442695
    %v657 = vpow.pop %v656
    %v658 = vmul.f32 %v655, 1.442695
    %v659 = vpow.pop %v658
    %v660 = vadd.f32 %v657, 1.0
    %v661 = vadd.f32 %v659, 1.0
    %v662 = vrcp.pop %v660
    %v663 = vmul.f32 1.0, %v662
    %v664 = vrcp.pop %v661
    %v665 = vmul.f32 1.0, %v664
    %666 = vst [vmem:[#allocation10] sm:$0xff] %v663
    %667 = vst [vmem:[#allocation10 + $0x8] sm:$0xff] %v665
    // Predicated region
    $region42: #{tpu_custom_call.1} parent=1 // pred_check
      _
    $region43: #{tpu_custom_call.1} parent=1 // pred_check_branch
      %669 = sbr.rel (0) target = $region45
    $region44: #{tpu_custom_call.1} parent=1 // pred_region
      %s671 = ssub.s32 256, 256
      %672 = vsyncadd [#allocation4], %s671
      %s673 = sshll.u32 [#allocation10], 4
      %s674 = int_to_ptr.vmem [resolvable:$true] %s673
      %679 = dma.vmem_to_hbm [thread:$0]  %s674, 256, %s6, [#allocation4], 128, 128, 8
    $region45: #{tpu_custom_call.1} parent=1 // pred_fallthru
      _
    // Predicated region
    $region46: #{tpu_custom_call.1} parent=1 // pred_check
      _
    $region47: #{tpu_custom_call.1} parent=1 // pred_check_branch
      %681 = sbr.rel (0) target = $region49
    $region48: #{tpu_custom_call.1} parent=1 // pred_region
      %682 = dma.done [#allocation4], 256
    $region49: #{tpu_custom_call.1} parent=1 // pred_fallthru
      _
    %683 = vsyncpa [#allocation3], 1
    %684 = vsyncpa [#allocation6], 1
    %685 = vsyncpa [#allocation9], 1
    %686 = vsyncpa [#allocation4], 1

</llo_original>
